<compile_context>
chip_gen: v7x
topology: tpu7x:2x2x1
jax: 0.10.0
libtpu: 0.0.40
codegen_flags: <defaults>
</compile_context>

<pallas_src>
import jax
import jax.numpy as jnp
from jax.experimental import pallas as pl
from jax.experimental.pallas import tpu as pltpu


def _round_up(n, m):
    return ((n + m - 1) // m) * m


def critic_kernel(x_ref, w1_ref, b1_ref, w2_ref, b2_ref, w3t_ref, b3_ref, out_ref):
    # x_ref:   (TB, in_f) batch tile of activations
    # w1_ref:  (in_f, H), b1_ref: (1, H)
    # w2_ref:  (H, H),    b2_ref: (1, H)
    # w3t_ref: (1, H) value-head row vector, b3_ref: (1, 1)
    # out_ref: (1, 1, TB) lane-dense transposed value row for this tile
    x = x_ref[...]
    h = jnp.dot(x, w1_ref[...], preferred_element_type=jnp.float32) + b1_ref[...]
    h = jnp.maximum(h, 0.0)
    h = jnp.dot(h, w2_ref[...], preferred_element_type=jnp.float32) + b2_ref[...]
    h = jnp.maximum(h, 0.0)
    # Layer 3 transposed: contract (1, H) with (TB, H) over H -> (1, TB).
    # Keeps the output lane-dense (unmasked vst, contiguous writeback DMA).
    v = jax.lax.dot_general(
        w3t_ref[...], h,
        dimension_numbers=(((1,), (1,)), ((), ())),
        preferred_element_type=jnp.float32)                 # (1, TB)
    out_ref[...] = (v + b3_ref[...])[None]                  # (1, 1, TB)


def prepare_critic_params(w1, b1, w2, b2, w3, b3):
    """Normalize parameter shapes for the kernel (done once, outside).

    Inputs use (in_features, out_features) layout (transposed vs. PyTorch).
    Returns (w1, b1, w2, b2, w3t, b3) with biases as (1, out) and the value
    head as a (1, H) row vector.
    """
    w1 = jnp.asarray(w1, jnp.float32)
    w2 = jnp.asarray(w2, jnp.float32)
    b1 = jnp.reshape(jnp.asarray(b1, jnp.float32), (1, -1))
    b2 = jnp.reshape(jnp.asarray(b2, jnp.float32), (1, -1))
    w3t = jnp.reshape(jnp.asarray(w3, jnp.float32), (1, -1))   # (H, 1) -> (1, H)
    b3 = jnp.reshape(jnp.asarray(b3, jnp.float32), (1, 1))
    return w1, b1, w2, b2, w3t, b3


def critic_forward(x, w1, b1, w2, b2, w3t, b3, *, block_batch=2048):
    """x: (B, input_size) f32 -> value (B, 1) f32."""
    B, in_f = x.shape
    H = w1.shape[1]

    # Batch tile: multiple of 128 (lane-dense transposed output), capped by
    # block_batch; when the batch is big enough, force >= 2 grid steps so the
    # input DMA pipelines and the grid axis can shard across v7x's 2 TCs.
    b128 = _round_up(B, 128)
    TB = min(block_batch, b128)
    TB = max(128, (TB // 128) * 128)
    if (b128 // TB) < 2 and b128 >= 256:
        TB = max(128, ((b128 // 2) // 128) * 128)
    Bp = _round_up(B, TB)
    n_tiles = Bp // TB

    # Pad the batch only when needed (zero rows; their outputs are sliced off).
    xp = x if Bp == B else jnp.pad(x, ((0, Bp - B), (0, 0)))

    flops = 2 * Bp * (in_f * H + H * H + H)
    bytes_accessed = 4 * (Bp * in_f + Bp
                          + w1.size + b1.size + w2.size + b2.size
                          + w3t.size + b3.size)

    out = pl.pallas_call(
        critic_kernel,
        out_shape=jax.ShapeDtypeStruct((n_tiles, 1, TB), jnp.float32),
        grid=(n_tiles,),
        in_specs=[
            pl.BlockSpec((TB, in_f), lambda i: (i, 0)),     # batch-tiled activations
            pl.BlockSpec(w1.shape, lambda i: (0, 0)),       # params: constant index ->
            pl.BlockSpec(b1.shape, lambda i: (0, 0)),       # VMEM-resident across tiles
            pl.BlockSpec(w2.shape, lambda i: (0, 0)),
            pl.BlockSpec(b2.shape, lambda i: (0, 0)),
            pl.BlockSpec(w3t.shape, lambda i: (0, 0)),
            pl.BlockSpec(b3.shape, lambda i: (0, 0)),
        ],
        out_specs=pl.BlockSpec((1, 1, TB), lambda i: (i, 0, 0)),  # lane-dense row/tile
        compiler_params=pltpu.CompilerParams(
            dimension_semantics=("parallel",)),
        cost_estimate=pl.CostEstimate(
            flops=int(flops), transcendentals=0,
            bytes_accessed=int(bytes_accessed)),
    )(xp, w1, b1, w2, b2, w3t, b3)

    # (n_tiles, 1, TB) -> (Bp, 1) in batch order, drop padded rows.
    return out.reshape(Bp, 1)[:B]


def init_linear_params(key, in_features, out_features):
    """PyTorch-style nn.Linear init (uniform +/- 1/sqrt(fan_in)).
    Returns weight (in_features, out_features) and bias (1, out_features)."""
    kw, kb = jax.random.split(key)
    bound = 1.0 / jnp.sqrt(jnp.float32(in_features))
    w = jax.random.uniform(kw, (in_features, out_features), jnp.float32, -bound, bound)
    b = jax.random.uniform(kb, (1, out_features), jnp.float32, -bound, bound)
    return w, b


def critic_reference(x, w1, b1, w2, b2, w3, b3):
    h1 = jnp.maximum(x @ w1 + b1, 0.0)
    h2 = jnp.maximum(h1 @ w2 + b2, 0.0)
    return h2 @ w3 + b3


if __name__ == "__main__":
    # Shapes consistent with Critic.__init__ / forward
    num_states = 24
    num_actions = 8
    hidden_size = 32
    input_size = num_states + num_actions  # 32

    key = jax.random.PRNGKey(0)
    k_x, k_xb, k1, k2, k3 = jax.random.split(key, 5)

    w1, b1 = init_linear_params(k1, input_size, hidden_size)
    w2, b2 = init_linear_params(k2, hidden_size, hidden_size)
    w3, b3 = init_linear_params(k3, hidden_size, 1)
    params = prepare_critic_params(w1, b1, w2, b2, w3, b3)

    # Small batch (single grid step, padded to one 128-row tile)
    batch = 8
    x = jax.random.normal(k_x, (batch, input_size), jnp.float32)
    value = jax.block_until_ready(critic_forward(x, *params))
    ref = critic_reference(x, w1, b1, w2, b2, w3, b3)
    assert value.shape == (batch, 1)
    assert jnp.allclose(value, ref, atol=1e-5, rtol=1e-5)

    # Larger, non-aligned batch exercising the multi-tile grid + padding path
    big_batch = 1000
    xb = jax.random.normal(k_xb, (big_batch, input_size), jnp.float32)
    value_b = jax.block_until_ready(
        critic_forward(xb, *params, block_batch=512))
    ref_b = critic_reference(xb, w1, b1, w2, b2, w3, b3)
    assert value_b.shape == (big_batch, 1)
    assert jnp.allclose(value_b, ref_b, atol=1e-4, rtol=1e-4)

    print("KERNEL_OK")
</pallas_src>

<mosaic_0001>
module attributes {stable_mosaic.version = 11 : i64} {
  func.func @critic_kernel(%arg0: i32, %arg1: memref<128x32xf32, #tpu.memory_space<vmem>>, %arg2: memref<32x32xf32, #tpu.memory_space<vmem>>, %arg3: memref<1x32xf32, #tpu.memory_space<vmem>>, %arg4: memref<32x32xf32, #tpu.memory_space<vmem>>, %arg5: memref<1x32xf32, #tpu.memory_space<vmem>>, %arg6: memref<1x32xf32, #tpu.memory_space<vmem>>, %arg7: memref<1x1xf32, #tpu.memory_space<vmem>>, %arg8: memref<1x1x128xf32, #tpu.memory_space<vmem>>) attributes {dimension_semantics = [#tpu.dimension_semantics<parallel>], iteration_bounds = array<i64: 1>, scalar_prefetch = 0 : i64, scratch_operands = 0 : i64, tpu.core_type = #tpu.core_type<tc>, window_params = [{transform_indices = @transform_0, window_bounds = array<i64: 128, 32>}, {pipeline_mode = #tpu.pipeline_mode<synchronous>, transform_indices = @transform_1, window_bounds = array<i64: 32, 32>}, {pipeline_mode = #tpu.pipeline_mode<synchronous>, transform_indices = @transform_2, window_bounds = array<i64: 1, 32>}, {pipeline_mode = #tpu.pipeline_mode<synchronous>, transform_indices = @transform_3, window_bounds = array<i64: 32, 32>}, {pipeline_mode = #tpu.pipeline_mode<synchronous>, transform_indices = @transform_4, window_bounds = array<i64: 1, 32>}, {pipeline_mode = #tpu.pipeline_mode<synchronous>, transform_indices = @transform_5, window_bounds = array<i64: 1, 32>}, {pipeline_mode = #tpu.pipeline_mode<synchronous>, transform_indices = @transform_6, window_bounds = array<i64: 1, 1>}, {transform_indices = @transform_7, window_bounds = array<i64: 1, 1, 128>}]} {
    %c0 = arith.constant 0 : index
    %c0_0 = arith.constant 0 : index
    %0 = vector.load %arg1[%c0, %c0_0] : memref<128x32xf32, #tpu.memory_space<vmem>>, vector<128x32xf32>
    %c0_1 = arith.constant 0 : index
    %c0_2 = arith.constant 0 : index
    %1 = vector.load %arg2[%c0_1, %c0_2] : memref<32x32xf32, #tpu.memory_space<vmem>>, vector<32x32xf32>
    %cst = arith.constant dense<0.000000e+00> : vector<128x32xf32>
    %2 = tpu.matmul %0, %1, %cst {dimension_numbers = #tpu.dot_dimension_numbers<[1], [0], [0], [1], [0, 0, 1, 1], [], []>} : vector<128x32xf32>, vector<32x32xf32>, vector<128x32xf32> -> vector<128x32xf32>
    %c0_3 = arith.constant 0 : index
    %c0_4 = arith.constant 0 : index
    %3 = vector.load %arg3[%c0_3, %c0_4] : memref<1x32xf32, #tpu.memory_space<vmem>>, vector<1x32xf32>
    %4 = vector.broadcast %3 : vector<1x32xf32> to vector<128x32xf32>
    %5 = arith.addf %2, %4 : vector<128x32xf32>
    %cst_5 = arith.constant 0.000000e+00 : f32
    %6 = vector.broadcast %cst_5 : f32 to vector<128x32xf32>
    %7 = arith.maximumf %5, %6 : vector<128x32xf32>
    %c0_6 = arith.constant 0 : index
    %c0_7 = arith.constant 0 : index
    %8 = vector.load %arg4[%c0_6, %c0_7] : memref<32x32xf32, #tpu.memory_space<vmem>>, vector<32x32xf32>
    %cst_8 = arith.constant dense<0.000000e+00> : vector<128x32xf32>
    %9 = tpu.matmul %7, %8, %cst_8 {dimension_numbers = #tpu.dot_dimension_numbers<[1], [0], [0], [1], [0, 0, 1, 1], [], []>} : vector<128x32xf32>, vector<32x32xf32>, vector<128x32xf32> -> vector<128x32xf32>
    %c0_9 = arith.constant 0 : index
    %c0_10 = arith.constant 0 : index
    %10 = vector.load %arg5[%c0_9, %c0_10] : memref<1x32xf32, #tpu.memory_space<vmem>>, vector<1x32xf32>
    %11 = vector.broadcast %10 : vector<1x32xf32> to vector<128x32xf32>
    %12 = arith.addf %9, %11 : vector<128x32xf32>
    %cst_11 = arith.constant 0.000000e+00 : f32
    %13 = vector.broadcast %cst_11 : f32 to vector<128x32xf32>
    %14 = arith.maximumf %12, %13 : vector<128x32xf32>
    %c0_12 = arith.constant 0 : index
    %c0_13 = arith.constant 0 : index
    %15 = vector.load %arg6[%c0_12, %c0_13] : memref<1x32xf32, #tpu.memory_space<vmem>>, vector<1x32xf32>
    %cst_14 = arith.constant dense<0.000000e+00> : vector<1x128xf32>
    %16 = tpu.matmul %15, %14, %cst_14 {dimension_numbers = #tpu.dot_dimension_numbers<[1], [1], [0], [0], [0, 0, 1, 0], [], []>} : vector<1x32xf32>, vector<128x32xf32>, vector<1x128xf32> -> vector<1x128xf32>
    %c0_15 = arith.constant 0 : index
    %c0_16 = arith.constant 0 : index
    %17 = vector.load %arg7[%c0_15, %c0_16] : memref<1x1xf32, #tpu.memory_space<vmem>>, vector<1x1xf32>
    %18 = vector.broadcast %17 : vector<1x1xf32> to vector<1x128xf32>
    %19 = arith.addf %16, %18 : vector<1x128xf32>
    %20 = vector.shape_cast %19 : vector<1x128xf32> to vector<1x1x128xf32>
    %c0_17 = arith.constant 0 : index
    %c0_18 = arith.constant 0 : index
    %c0_19 = arith.constant 0 : index
    %21 = vector.load %arg8[%c0_17, %c0_18, %c0_19] : memref<1x1x128xf32, #tpu.memory_space<vmem>>, vector<1x1x128xf32>
    tpu.vector_store %arg8[%c0_17, %c0_18, %c0_19], %20 {strides = array<i32>} : memref<1x1x128xf32, #tpu.memory_space<vmem>>, vector<1x1x128xf32>,
    return
  }
  func.func @transform_0(%arg0: i32) -> (i32, i32) {
    %c0_i32 = arith.constant 0 : i32
    %c0_i32_0 = arith.constant 0 : i32
    return %arg0, %c0_i32 : i32, i32
  }
  func.func @transform_1(%arg0: i32) -> (i32, i32) {
    %c0_i32 = arith.constant 0 : i32
    %c0_i32_0 = arith.constant 0 : i32
    %c0_i32_1 = arith.constant 0 : i32
    return %c0_i32, %c0_i32_0 : i32, i32
  }
  func.func @transform_2(%arg0: i32) -> (i32, i32) {
    %c0_i32 = arith.constant 0 : i32
    %c0_i32_0 = arith.constant 0 : i32
    %c0_i32_1 = arith.constant 0 : i32
    return %c0_i32, %c0_i32_0 : i32, i32
  }
  func.func @transform_3(%arg0: i32) -> (i32, i32) {
    %c0_i32 = arith.constant 0 : i32
    %c0_i32_0 = arith.constant 0 : i32
    %c0_i32_1 = arith.constant 0 : i32
    return %c0_i32, %c0_i32_0 : i32, i32
  }
  func.func @transform_4(%arg0: i32) -> (i32, i32) {
    %c0_i32 = arith.constant 0 : i32
    %c0_i32_0 = arith.constant 0 : i32
    %c0_i32_1 = arith.constant 0 : i32
    return %c0_i32, %c0_i32_0 : i32, i32
  }
  func.func @transform_5(%arg0: i32) -> (i32, i32) {
    %c0_i32 = arith.constant 0 : i32
    %c0_i32_0 = arith.constant 0 : i32
    %c0_i32_1 = arith.constant 0 : i32
    return %c0_i32, %c0_i32_0 : i32, i32
  }
  func.func @transform_6(%arg0: i32) -> (i32, i32) {
    %c0_i32 = arith.constant 0 : i32
    %c0_i32_0 = arith.constant 0 : i32
    %c0_i32_1 = arith.constant 0 : i32
    return %c0_i32, %c0_i32_0 : i32, i32
  }
  func.func @transform_7(%arg0: i32) -> (i32, i32, i32) {
    %c0_i32 = arith.constant 0 : i32
    %c0_i32_0 = arith.constant 0 : i32
    %c0_i32_1 = arith.constant 0 : i32
    return %arg0, %c0_i32, %c0_i32_0 : i32, i32, i32
  }
}

</mosaic_0001>

<llo_original>
// kernel: tpu_custom_call.1
$region0: #{tpu_custom_call.1}
  #allocation0 [shape = 'u32[]', space=smem, size = 0x4, offset = 0x4, fixed_abs, tag = 'smem constant byte address 0x4 - core index']
  #allocation1 [shape = 'u32[144,128]{1,0:T(1,128)}', space=vmem, size = 0x12000, scoped, tag = 'internal scratch']
  #allocation2 [shape = 'f32[1,1]{1,0:T(1,128)S(1)}', space=vmem, size = 0x200, scoped, tag = 'scoped memory for tpu_custom_call.1']
  %s0 = inlined_call_operand.vmem [shape: f32[128,32], index: 0, kind: input, shape index: {}]
  %s1 = inlined_call_operand.vmem [shape: f32[32,32], index: 1, kind: input, shape index: {}]
  %s2 = inlined_call_operand.vmem [shape: f32[1,32], index: 2, kind: input, shape index: {}]
  %s3 = inlined_call_operand.vmem [shape: f32[32,32], index: 3, kind: input, shape index: {}]
  %s4 = inlined_call_operand.vmem [shape: f32[1,32], index: 4, kind: input, shape index: {}]
  %s5 = inlined_call_operand.vmem [shape: f32[1,32], index: 5, kind: input, shape index: {}]
  %s6 = inlined_call_operand.<no memory space> [shape: f32[1,1], index: 6, kind: input, shape index: {}]
  %s7 = inlined_call_operand.hbm [shape: f32[1,1,128], index: 7, kind: output, shape index: {}]
  %s8 = sld [smem:[#allocation0]]
  $region38: #{tpu_custom_call.1} parent=0
    _
  %s10 = ssub.s32 1, %s8
  %s11 = scalar_select 0, %s10, %s8
  %v12 = vstv %s6
  %13 = vst [vmem:[#allocation2] sm:$0x1] %v12
  $region1: #{tpu_custom_call.1} parent=0
    #allocation3 [shape = 'u8[512]{0}', space=vmem, size = 0x400, scoped, tag = 'output window, operand 0, single buffered']
    #allocation4 [shape = 's32[1]{0}', space=sflag, size = 0x4, scoped, tag = 'scoped memory for tpu_custom_call.1']
    %14 = vsyncpa [#allocation4], 0
    // Predicated region
    $region2: #{tpu_custom_call.1} parent=1 // pred_check
      _
    $region3: #{tpu_custom_call.1} parent=1 // pred_check_branch
      %16 = sbr.rel (0) target = $region5
    $region4: #{tpu_custom_call.1} parent=1 // pred_region
      _
    $region5: #{tpu_custom_call.1} parent=1 // pred_fallthru
      _
    // Predicated region
    $region6: #{tpu_custom_call.1} parent=1 // pred_check
      _
    $region7: #{tpu_custom_call.1} parent=1 // pred_check_branch
      %18 = sbr.rel (0) target = $region9
    $region8: #{tpu_custom_call.1} parent=1 // pred_region
      _
    $region9: #{tpu_custom_call.1} parent=1 // pred_fallthru
      _
    // Predicated region
    $region10: #{tpu_custom_call.1} parent=1 // pred_check
      _
    $region11: #{tpu_custom_call.1} parent=1 // pred_check_branch
      %20 = sbr.rel (0) target = $region13
    $region12: #{tpu_custom_call.1} parent=1 // pred_region
      _
    $region13: #{tpu_custom_call.1} parent=1 // pred_fallthru
      _
    // Predicated region
    $region14: #{tpu_custom_call.1} parent=1 // pred_check
      _
    $region15: #{tpu_custom_call.1} parent=1 // pred_check_branch
      %22 = sbr.rel (0) target = $region17
    $region16: #{tpu_custom_call.1} parent=1 // pred_region
      _
    $region17: #{tpu_custom_call.1} parent=1 // pred_fallthru
      _
    // Predicated region
    $region18: #{tpu_custom_call.1} parent=1 // pred_check
      _
    $region19: #{tpu_custom_call.1} parent=1 // pred_check_branch
      %24 = sbr.rel (0) target = $region21
    $region20: #{tpu_custom_call.1} parent=1 // pred_region
      _
    $region21: #{tpu_custom_call.1} parent=1 // pred_fallthru
      _
    // Predicated region
    $region22: #{tpu_custom_call.1} parent=1 // pred_check
      _
    $region23: #{tpu_custom_call.1} parent=1 // pred_check_branch
      %26 = sbr.rel (0) target = $region25
    $region24: #{tpu_custom_call.1} parent=1 // pred_region
      _
    $region25: #{tpu_custom_call.1} parent=1 // pred_fallthru
      _
    // Predicated region
    $region26: #{tpu_custom_call.1} parent=1 // pred_check
      _
    $region27: #{tpu_custom_call.1} parent=1 // pred_check_branch
      %28 = sbr.rel (0) target = $region29
    $region28: #{tpu_custom_call.1} parent=1 // pred_region
      _
    $region29: #{tpu_custom_call.1} parent=1 // pred_fallthru
      _
    %v29 = vld [vmem:[%s0] sm:$0xff]
    %v30 = vld [vmem:[%s0 + $0x8] sm:$0xff]
    %v31 = vld [vmem:[%s0 + $0x10] sm:$0xff]
    %v32 = vld [vmem:[%s0 + $0x18] sm:$0xff]
    %v33 = vld [vmem:[%s0 + $0x20] sm:$0xff]
    %v34 = vld [vmem:[%s0 + $0x28] sm:$0xff]
    %v35 = vld [vmem:[%s0 + $0x30] sm:$0xff]
    %v36 = vld [vmem:[%s0 + $0x38] sm:$0xff]
    %v37 = vld [vmem:[%s0 + $0x40] sm:$0xff]
    %v38 = vld [vmem:[%s0 + $0x48] sm:$0xff]
    %v39 = vld [vmem:[%s0 + $0x50] sm:$0xff]
    %v40 = vld [vmem:[%s0 + $0x58] sm:$0xff]
    %v41 = vld [vmem:[%s0 + $0x60] sm:$0xff]
    %v42 = vld [vmem:[%s0 + $0x68] sm:$0xff]
    %v43 = vld [vmem:[%s0 + $0x70] sm:$0xff]
    %v44 = vld [vmem:[%s0 + $0x78] sm:$0xff]
    %v45 = vld [vmem:[%s1] sm:$0xff]
    %v46 = vld [vmem:[%s1 + $0x8] sm:$0xff]
    %v47 = vld [vmem:[%s1 + $0x10] sm:$0xff]
    %v48 = vld [vmem:[%s1 + $0x18] sm:$0xff]
    %v49 = vld [vmem:[%s2] sm:$0x1]
    %v51 = vlaneseq
    %v52 = vshrl.u32 %v51, 7
    %v53 = vsub.s32 0, %v52
    %v54 = vrot.slane %v49, %v53
    %vm56 = vcmask 261120
    %v58 = vsel %vm56, %v29, 0
    %v61 = vsel %vm56, %v30, 0
    %v64 = vsel %vm56, %v31, 0
    %v67 = vsel %vm56, %v32, 0
    %v70 = vsel %vm56, %v33, 0
    %v73 = vsel %vm56, %v34, 0
    %v76 = vsel %vm56, %v35, 0
    %v79 = vsel %vm56, %v36, 0
    %v82 = vsel %vm56, %v37, 0
    %v85 = vsel %vm56, %v38, 0
    %v88 = vsel %vm56, %v39, 0
    %v91 = vsel %vm56, %v40, 0
    %v94 = vsel %vm56, %v41, 0
    %v97 = vsel %vm56, %v42, 0
    %v100 = vsel %vm56, %v43, 0
    %v103 = vsel %vm56, %v44, 0
    %105 = vmatprep.subr.mxu0 0.0
    %106 = vmatpush1.msra.mxu0 %v45
    %107 = vmatprep.subr.mxu0 0.0
    %108 = vmatpush1.msra.mxu0 %v46
    %109 = vmatprep.subr.mxu0 0.0
    %110 = vmatpush1.msra.mxu0 %v47
    %111 = vmatprep.subr.mxu0 0.0
    %112 = vmatpush1.msra.mxu0 %v48
    %113 = vmatprep.subr.mxu0 0.0
    %114 = vmatpush1.msra.mxu0 0.0
    %115 = vmatprep.subr.mxu0 0.0
    %116 = vmatpush1.msra.mxu0 0.0
    %117 = vmatprep.subr.mxu0 0.0
    %118 = vmatpush1.msra.mxu0 0.0
    %119 = vmatprep.subr.mxu0 0.0
    %120 = vmatpush1.msra.mxu0 0.0
    %121 = vmatprep.subr.mxu0 0.0
    %122 = vmatpush1.msra.mxu0 0.0
    %123 = vmatprep.subr.mxu0 0.0
    %124 = vmatpush1.msra.mxu0 0.0
    %125 = vmatprep.subr.mxu0 0.0
    %126 = vmatpush1.msra.mxu0 0.0
    %127 = vmatprep.subr.mxu0 0.0
    %128 = vmatpush1.msra.mxu0 0.0
    %129 = vmatprep.subr.mxu0 0.0
    %130 = vmatpush1.msra.mxu0 0.0
    %131 = vmatprep.subr.mxu0 0.0
    %132 = vmatpush1.msra.mxu0 0.0
    %133 = vmatprep.subr.mxu0 0.0
    %134 = vmatpush1.msra.mxu0 0.0
    %135 = vmatprep.subr.mxu0 0.0
    %136 = vmatpush1.msra.mxu0 0.0
    %137 = vmatprep.subr.mxu0 0.0
    %138 = vmatpush1.msra.mxu0 0.0
    %139 = vmatprep.subr.mxu0 0.0
    %140 = vmatpush1.msra.mxu0 0.0
    %141 = vmatprep.subr.mxu0 0.0
    %142 = vmatpush1.msra.mxu0 0.0
    %143 = vmatprep.subr.mxu0 0.0
    %144 = vmatpush1.msra.mxu0 0.0
    %145 = vmatprep.subr.mxu0 0.0
    %146 = vmatpush1.msra.mxu0 0.0
    %147 = vmatprep.subr.mxu0 0.0
    %148 = vmatpush1.msra.mxu0 0.0
    %149 = vmatprep.subr.mxu0 0.0
    %150 = vmatpush1.msra.mxu0 0.0
    %151 = vmatprep.subr.mxu0 0.0
    %152 = vmatpush1.msra.mxu0 0.0
    %153 = vmatprep.subr.mxu0 0.0
    %154 = vmatpush1.msra.mxu0 0.0
    %155 = vmatprep.subr.mxu0 0.0
    %156 = vmatpush1.msra.mxu0 0.0
    %157 = vmatprep.subr.mxu0 0.0
    %158 = vmatpush1.msra.mxu0 0.0
    %159 = vmatprep.subr.mxu0 0.0
    %160 = vmatpush1.msra.mxu0 0.0
    %161 = vmatprep.subr.mxu0 0.0
    %162 = vmatpush1.msra.mxu0 0.0
    %163 = vmatprep.subr.mxu0 0.0
    %164 = vmatpush1.msra.mxu0 0.0
    %165 = vmatprep.subr.mxu0 0.0
    %166 = vmatpush1.msra.mxu0 0.0
    %167 = vmatprep.subr.mxu0 0.0
    %168 = vmatpush1.msra.mxu0 0.0
    %169 = vmatprep.mubr.f32.mxu0 0.0
    %170 = vmatmul.mubr.f32.gmra.mrb[0].mxu0 %v58
    %v171 = vpop.f32.mrb[0].mxu0
    %v172 = vadd.f32 %v54, %v171
    %v173 = vpop.f32.mrb[0].mxu0
    %174 = vmatprep.mubr.f32.mxu0 0.0
    %175 = vmatmul.mubr.f32.gmra.mrb[0].mxu0 %v61
    %v176 = vpop.f32.mrb[0].mxu0
    %v177 = vadd.f32 %v54, %v176
    %v178 = vpop.f32.mrb[0].mxu0
    %179 = vmatprep.mubr.f32.mxu0 0.0
    %180 = vmatmul.mubr.f32.gmra.mrb[0].mxu0 %v64
    %v181 = vpop.f32.mrb[0].mxu0
    %v182 = vadd.f32 %v54, %v181
    %v183 = vpop.f32.mrb[0].mxu0
    %184 = vmatprep.mubr.f32.mxu0 0.0
    %185 = vmatmul.mubr.f32.gmra.mrb[0].mxu0 %v67
    %v186 = vpop.f32.mrb[0].mxu0
    %v187 = vadd.f32 %v54, %v186
    %v188 = vpop.f32.mrb[0].mxu0
    %189 = vmatprep.mubr.f32.mxu0 0.0
    %190 = vmatmul.mubr.f32.gmra.mrb[0].mxu0 %v70
    %v191 = vpop.f32.mrb[0].mxu0
    %v192 = vadd.f32 %v54, %v191
    %v193 = vpop.f32.mrb[0].mxu0
    %194 = vmatprep.mubr.f32.mxu0 0.0
    %195 = vmatmul.mubr.f32.gmra.mrb[0].mxu0 %v73
    %v196 = vpop.f32.mrb[0].mxu0
    %v197 = vadd.f32 %v54, %v196
    %v198 = vpop.f32.mrb[0].mxu0
    %199 = vmatprep.mubr.f32.mxu0 0.0
    %200 = vmatmul.mubr.f32.gmra.mrb[0].mxu0 %v76
    %v201 = vpop.f32.mrb[0].mxu0
    %v202 = vadd.f32 %v54, %v201
    %v203 = vpop.f32.mrb[0].mxu0
    %204 = vmatprep.mubr.f32.mxu0 0.0
    %205 = vmatmul.mubr.f32.gmra.mrb[0].mxu0 %v79
    %v206 = vpop.f32.mrb[0].mxu0
    %v207 = vadd.f32 %v54, %v206
    %v208 = vpop.f32.mrb[0].mxu0
    %209 = vmatprep.mubr.f32.mxu0 0.0
    %210 = vmatmul.mubr.f32.gmra.mrb[0].mxu0 %v82
    %v211 = vpop.f32.mrb[0].mxu0
    %v212 = vadd.f32 %v54, %v211
    %v213 = vpop.f32.mrb[0].mxu0
    %214 = vmatprep.mubr.f32.mxu0 0.0
    %215 = vmatmul.mubr.f32.gmra.mrb[0].mxu0 %v85
    %v216 = vpop.f32.mrb[0].mxu0
    %v217 = vadd.f32 %v54, %v216
    %v218 = vpop.f32.mrb[0].mxu0
    %219 = vmatprep.mubr.f32.mxu0 0.0
    %220 = vmatmul.mubr.f32.gmra.mrb[0].mxu0 %v88
    %v221 = vpop.f32.mrb[0].mxu0
    %v222 = vadd.f32 %v54, %v221
    %v223 = vpop.f32.mrb[0].mxu0
    %224 = vmatprep.mubr.f32.mxu0 0.0
    %225 = vmatmul.mubr.f32.gmra.mrb[0].mxu0 %v91
    %v226 = vpop.f32.mrb[0].mxu0
    %v227 = vadd.f32 %v54, %v226
    %v228 = vpop.f32.mrb[0].mxu0
    %229 = vmatprep.mubr.f32.mxu0 0.0
    %230 = vmatmul.mubr.f32.gmra.mrb[0].mxu0 %v94
    %v231 = vpop.f32.mrb[0].mxu0
    %v232 = vadd.f32 %v54, %v231
    %v233 = vpop.f32.mrb[0].mxu0
    %234 = vmatprep.mubr.f32.mxu0 0.0
    %235 = vmatmul.mubr.f32.gmra.mrb[0].mxu0 %v97
    %v236 = vpop.f32.mrb[0].mxu0
    %v237 = vadd.f32 %v54, %v236
    %v238 = vpop.f32.mrb[0].mxu0
    %239 = vmatprep.mubr.f32.mxu0 0.0
    %240 = vmatmul.mubr.f32.gmra.mrb[0].mxu0 %v100
    %v241 = vpop.f32.mrb[0].mxu0
    %v242 = vadd.f32 %v54, %v241
    %v243 = vpop.f32.mrb[0].mxu0
    %244 = vmatprep.mubr.f32.mxu0 0.0
    %245 = vmatmul.mubr.f32.gmra.mrb[0].mxu0 %v103
    %v246 = vpop.f32.mrb[0].mxu0
    %v247 = vadd.f32 %v54, %v246
    %v248 = vpop.f32.mrb[0].mxu0
    %249 = vdwg.mxu0
    %v250 = vmax.f32 %v172, 0.0
    %v251 = vmax.f32 %v177, 0.0
    %v252 = vmax.f32 %v182, 0.0
    %v253 = vmax.f32 %v187, 0.0
    %v254 = vmax.f32 %v192, 0.0
    %v255 = vmax.f32 %v197, 0.0
    %v256 = vmax.f32 %v202, 0.0
    %v257 = vmax.f32 %v207, 0.0
    %v258 = vmax.f32 %v212, 0.0
    %v259 = vmax.f32 %v217, 0.0
    %v260 = vmax.f32 %v222, 0.0
    %v261 = vmax.f32 %v227, 0.0
    %v262 = vmax.f32 %v232, 0.0
    %v263 = vmax.f32 %v237, 0.0
    %v264 = vmax.f32 %v242, 0.0
    %v265 = vmax.f32 %v247, 0.0
    %v266 = vld [vmem:[%s3] sm:$0xff]
    %v267 = vld [vmem:[%s3 + $0x8] sm:$0xff]
    %v268 = vld [vmem:[%s3 + $0x10] sm:$0xff]
    %v269 = vld [vmem:[%s3 + $0x18] sm:$0xff]
    %v270 = vld [vmem:[%s4] sm:$0x1]
    %v272 = vlaneseq
    %v273 = vshrl.u32 %v272, 7
    %v274 = vsub.s32 0, %v273
    %v275 = vrot.slane %v270, %v274
    %v278 = vsel %vm56, %v250, 0
    %v281 = vsel %vm56, %v251, 0
    %v284 = vsel %vm56, %v252, 0
    %v287 = vsel %vm56, %v253, 0
    %v290 = vsel %vm56, %v254, 0
    %v293 = vsel %vm56, %v255, 0
    %v296 = vsel %vm56, %v256, 0
    %v299 = vsel %vm56, %v257, 0
    %v302 = vsel %vm56, %v258, 0
    %v305 = vsel %vm56, %v259, 0
    %v308 = vsel %vm56, %v260, 0
    %v311 = vsel %vm56, %v261, 0
    %v314 = vsel %vm56, %v262, 0
    %v317 = vsel %vm56, %v263, 0
    %v320 = vsel %vm56, %v264, 0
    %v323 = vsel %vm56, %v265, 0
    %325 = vmatprep.subr.mxu0 0.0
    %326 = vmatpush1.msra.mxu0 %v266
    %327 = vmatprep.subr.mxu0 0.0
    %328 = vmatpush1.msra.mxu0 %v267
    %329 = vmatprep.subr.mxu0 0.0
    %330 = vmatpush1.msra.mxu0 %v268
    %331 = vmatprep.subr.mxu0 0.0
    %332 = vmatpush1.msra.mxu0 %v269
    %333 = vmatprep.subr.mxu0 0.0
    %334 = vmatpush1.msra.mxu0 0.0
    %335 = vmatprep.subr.mxu0 0.0
    %336 = vmatpush1.msra.mxu0 0.0
    %337 = vmatprep.subr.mxu0 0.0
    %338 = vmatpush1.msra.mxu0 0.0
    %339 = vmatprep.subr.mxu0 0.0
    %340 = vmatpush1.msra.mxu0 0.0
    %341 = vmatprep.subr.mxu0 0.0
    %342 = vmatpush1.msra.mxu0 0.0
    %343 = vmatprep.subr.mxu0 0.0
    %344 = vmatpush1.msra.mxu0 0.0
    %345 = vmatprep.subr.mxu0 0.0
    %346 = vmatpush1.msra.mxu0 0.0
    %347 = vmatprep.subr.mxu0 0.0
    %348 = vmatpush1.msra.mxu0 0.0
    %349 = vmatprep.subr.mxu0 0.0
    %350 = vmatpush1.msra.mxu0 0.0
    %351 = vmatprep.subr.mxu0 0.0
    %352 = vmatpush1.msra.mxu0 0.0
    %353 = vmatprep.subr.mxu0 0.0
    %354 = vmatpush1.msra.mxu0 0.0
    %355 = vmatprep.subr.mxu0 0.0
    %356 = vmatpush1.msra.mxu0 0.0
    %357 = vmatprep.subr.mxu0 0.0
    %358 = vmatpush1.msra.mxu0 0.0
    %359 = vmatprep.subr.mxu0 0.0
    %360 = vmatpush1.msra.mxu0 0.0
    %361 = vmatprep.subr.mxu0 0.0
    %362 = vmatpush1.msra.mxu0 0.0
    %363 = vmatprep.subr.mxu0 0.0
    %364 = vmatpush1.msra.mxu0 0.0
    %365 = vmatprep.subr.mxu0 0.0
    %366 = vmatpush1.msra.mxu0 0.0
    %367 = vmatprep.subr.mxu0 0.0
    %368 = vmatpush1.msra.mxu0 0.0
    %369 = vmatprep.subr.mxu0 0.0
    %370 = vmatpush1.msra.mxu0 0.0
    %371 = vmatprep.subr.mxu0 0.0
    %372 = vmatpush1.msra.mxu0 0.0
    %373 = vmatprep.subr.mxu0 0.0
    %374 = vmatpush1.msra.mxu0 0.0
    %375 = vmatprep.subr.mxu0 0.0
    %376 = vmatpush1.msra.mxu0 0.0
    %377 = vmatprep.subr.mxu0 0.0
    %378 = vmatpush1.msra.mxu0 0.0
    %379 = vmatprep.subr.mxu0 0.0
    %380 = vmatpush1.msra.mxu0 0.0
    %381 = vmatprep.subr.mxu0 0.0
    %382 = vmatpush1.msra.mxu0 0.0
    %383 = vmatprep.subr.mxu0 0.0
    %384 = vmatpush1.msra.mxu0 0.0
    %385 = vmatprep.subr.mxu0 0.0
    %386 = vmatpush1.msra.mxu0 0.0
    %387 = vmatprep.subr.mxu0 0.0
    %388 = vmatpush1.msra.mxu0 0.0
    %389 = vmatprep.mubr.f32.mxu0 0.0
    %390 = vmatmul.mubr.f32.gmra.mrb[0].mxu0 %v278
    %v391 = vpop.f32.mrb[0].mxu0
    %v392 = vadd.f32 %v275, %v391
    %v393 = vpop.f32.mrb[0].mxu0
    %394 = vmatprep.mubr.f32.mxu0 0.0
    %395 = vmatmul.mubr.f32.gmra.mrb[0].mxu0 %v281
    %v396 = vpop.f32.mrb[0].mxu0
    %v397 = vadd.f32 %v275, %v396
    %v398 = vpop.f32.mrb[0].mxu0
    %399 = vmatprep.mubr.f32.mxu0 0.0
    %400 = vmatmul.mubr.f32.gmra.mrb[0].mxu0 %v284
    %v401 = vpop.f32.mrb[0].mxu0
    %v402 = vadd.f32 %v275, %v401
    %v403 = vpop.f32.mrb[0].mxu0
    %404 = vmatprep.mubr.f32.mxu0 0.0
    %405 = vmatmul.mubr.f32.gmra.mrb[0].mxu0 %v287
    %v406 = vpop.f32.mrb[0].mxu0
    %v407 = vadd.f32 %v275, %v406
    %v408 = vpop.f32.mrb[0].mxu0
    %409 = vmatprep.mubr.f32.mxu0 0.0
    %410 = vmatmul.mubr.f32.gmra.mrb[0].mxu0 %v290
    %v411 = vpop.f32.mrb[0].mxu0
    %v412 = vadd.f32 %v275, %v411
    %v413 = vpop.f32.mrb[0].mxu0
    %414 = vmatprep.mubr.f32.mxu0 0.0
    %415 = vmatmul.mubr.f32.gmra.mrb[0].mxu0 %v293
    %v416 = vpop.f32.mrb[0].mxu0
    %v417 = vadd.f32 %v275, %v416
    %v418 = vpop.f32.mrb[0].mxu0
    %419 = vmatprep.mubr.f32.mxu0 0.0
    %420 = vmatmul.mubr.f32.gmra.mrb[0].mxu0 %v296
    %v421 = vpop.f32.mrb[0].mxu0
    %v422 = vadd.f32 %v275, %v421
    %v423 = vpop.f32.mrb[0].mxu0
    %424 = vmatprep.mubr.f32.mxu0 0.0
    %425 = vmatmul.mubr.f32.gmra.mrb[0].mxu0 %v299
    %v426 = vpop.f32.mrb[0].mxu0
    %v427 = vadd.f32 %v275, %v426
    %v428 = vpop.f32.mrb[0].mxu0
    %429 = vmatprep.mubr.f32.mxu0 0.0
    %430 = vmatmul.mubr.f32.gmra.mrb[0].mxu0 %v302
    %v431 = vpop.f32.mrb[0].mxu0
    %v432 = vadd.f32 %v275, %v431
    %v433 = vpop.f32.mrb[0].mxu0
    %434 = vmatprep.mubr.f32.mxu0 0.0
    %435 = vmatmul.mubr.f32.gmra.mrb[0].mxu0 %v305
    %v436 = vpop.f32.mrb[0].mxu0
    %v437 = vadd.f32 %v275, %v436
    %v438 = vpop.f32.mrb[0].mxu0
    %439 = vmatprep.mubr.f32.mxu0 0.0
    %440 = vmatmul.mubr.f32.gmra.mrb[0].mxu0 %v308
    %v441 = vpop.f32.mrb[0].mxu0
    %v442 = vadd.f32 %v275, %v441
    %v443 = vpop.f32.mrb[0].mxu0
    %444 = vmatprep.mubr.f32.mxu0 0.0
    %445 = vmatmul.mubr.f32.gmra.mrb[0].mxu0 %v311
    %v446 = vpop.f32.mrb[0].mxu0
    %v447 = vadd.f32 %v275, %v446
    %v448 = vpop.f32.mrb[0].mxu0
    %449 = vmatprep.mubr.f32.mxu0 0.0
    %450 = vmatmul.mubr.f32.gmra.mrb[0].mxu0 %v314
    %v451 = vpop.f32.mrb[0].mxu0
    %v452 = vadd.f32 %v275, %v451
    %v453 = vpop.f32.mrb[0].mxu0
    %454 = vmatprep.mubr.f32.mxu0 0.0
    %455 = vmatmul.mubr.f32.gmra.mrb[0].mxu0 %v317
    %v456 = vpop.f32.mrb[0].mxu0
    %v457 = vadd.f32 %v275, %v456
    %v458 = vpop.f32.mrb[0].mxu0
    %459 = vmatprep.mubr.f32.mxu0 0.0
    %460 = vmatmul.mubr.f32.gmra.mrb[0].mxu0 %v320
    %v461 = vpop.f32.mrb[0].mxu0
    %v462 = vadd.f32 %v275, %v461
    %v463 = vpop.f32.mrb[0].mxu0
    %464 = vmatprep.mubr.f32.mxu0 0.0
    %465 = vmatmul.mubr.f32.gmra.mrb[0].mxu0 %v323
    %v466 = vpop.f32.mrb[0].mxu0
    %v467 = vadd.f32 %v275, %v466
    %v468 = vpop.f32.mrb[0].mxu0
    %469 = vdwg.mxu0
    %v470 = vmax.f32 %v392, 0.0
    %v471 = vmax.f32 %v397, 0.0
    %v472 = vmax.f32 %v402, 0.0
    %v473 = vmax.f32 %v407, 0.0
    %v474 = vmax.f32 %v412, 0.0
    %v475 = vmax.f32 %v417, 0.0
    %v476 = vmax.f32 %v422, 0.0
    %v477 = vmax.f32 %v427, 0.0
    %v478 = vmax.f32 %v432, 0.0
    %v479 = vmax.f32 %v437, 0.0
    %v480 = vmax.f32 %v442, 0.0
    %v481 = vmax.f32 %v447, 0.0
    %v482 = vmax.f32 %v452, 0.0
    %v483 = vmax.f32 %v457, 0.0
    %v484 = vmax.f32 %v462, 0.0
    %v485 = vmax.f32 %v467, 0.0
    %v486 = vld [vmem:[%s5] sm:$0x1]
    %v487 = vld [vmem:[#allocation2] sm:$0x1]
    %489 = vset.pattern.permute.xlu0 0
    %490 = vperm.xlu0 %489, %v487
    %v491 = vpop.permute.xlu0 %490
    %v493 = vlaneseq
    %v494 = vshrl.u32 %v493, 7
    %v495 = vsub.s32 0, %v494
    %v496 = vrot.slane %v491, %v495
    %v498 = vsel %vm56, %v486, 0
    %v501 = vsel %vm56, %v470, 0
    %v504 = vsel %vm56, %v471, 0
    %v507 = vsel %vm56, %v472, 0
    %v510 = vsel %vm56, %v473, 0
    %v513 = vsel %vm56, %v474, 0
    %v516 = vsel %vm56, %v475, 0
    %v519 = vsel %vm56, %v476, 0
    %v522 = vsel %vm56, %v477, 0
    %v525 = vsel %vm56, %v478, 0
    %v528 = vsel %vm56, %v479, 0
    %v531 = vsel %vm56, %v480, 0
    %v534 = vsel %vm56, %v481, 0
    %v537 = vsel %vm56, %v482, 0
    %v540 = vsel %vm56, %v483, 0
    %v543 = vsel %vm56, %v484, 0
    %v546 = vsel %vm56, %v485, 0
    %548 = vmatprep.subr.mxu0 0.0
    %549 = vmatpush1.xpose.msra.mxu0 %v501
    %550 = vmatprep.subr.mxu0 0.0
    %551 = vmatpush1.xpose.msra.mxu0 %v504
    %552 = vmatprep.subr.mxu0 0.0
    %553 = vmatpush1.xpose.msra.mxu0 %v507
    %554 = vmatprep.subr.mxu0 0.0
    %555 = vmatpush1.xpose.msra.mxu0 %v510
    %556 = vmatprep.subr.mxu0 0.0
    %557 = vmatpush1.xpose.msra.mxu0 %v513
    %558 = vmatprep.subr.mxu0 0.0
    %559 = vmatpush1.xpose.msra.mxu0 %v516
    %560 = vmatprep.subr.mxu0 0.0
    %561 = vmatpush1.xpose.msra.mxu0 %v519
    %562 = vmatprep.subr.mxu0 0.0
    %563 = vmatpush1.xpose.msra.mxu0 %v522
    %564 = vmatprep.subr.mxu0 0.0
    %565 = vmatpush1.xpose.msra.mxu0 %v525
    %566 = vmatprep.subr.mxu0 0.0
    %567 = vmatpush1.xpose.msra.mxu0 %v528
    %568 = vmatprep.subr.mxu0 0.0
    %569 = vmatpush1.xpose.msra.mxu0 %v531
    %570 = vmatprep.subr.mxu0 0.0
    %571 = vmatpush1.xpose.msra.mxu0 %v534
    %572 = vmatprep.subr.mxu0 0.0
    %573 = vmatpush1.xpose.msra.mxu0 %v537
    %574 = vmatprep.subr.mxu0 0.0
    %575 = vmatpush1.xpose.msra.mxu0 %v540
    %576 = vmatprep.subr.mxu0 0.0
    %577 = vmatpush1.xpose.msra.mxu0 %v543
    %578 = vmatprep.subr.mxu0 0.0
    %579 = vmatpush1.xpose.msra.mxu0 %v546
    %580 = vmatprep.subr.mxu0 0.0
    %581 = vmatpush1.xpose.msra.mxu0 0.0
    %582 = vmatprep.subr.mxu0 0.0
    %583 = vmatpush1.xpose.msra.mxu0 0.0
    %584 = vmatprep.subr.mxu0 0.0
    %585 = vmatpush1.xpose.msra.mxu0 0.0
    %586 = vmatprep.subr.mxu0 0.0
    %587 = vmatpush1.xpose.msra.mxu0 0.0
    %588 = vmatprep.subr.mxu0 0.0
    %589 = vmatpush1.xpose.msra.mxu0 0.0
    %590 = vmatprep.subr.mxu0 0.0
    %591 = vmatpush1.xpose.msra.mxu0 0.0
    %592 = vmatprep.subr.mxu0 0.0
    %593 = vmatpush1.xpose.msra.mxu0 0.0
    %594 = vmatprep.subr.mxu0 0.0
    %595 = vmatpush1.xpose.msra.mxu0 0.0
    %596 = vmatprep.subr.mxu0 0.0
    %597 = vmatpush1.xpose.msra.mxu0 0.0
    %598 = vmatprep.subr.mxu0 0.0
    %599 = vmatpush1.xpose.msra.mxu0 0.0
    %600 = vmatprep.subr.mxu0 0.0
    %601 = vmatpush1.xpose.msra.mxu0 0.0
    %602 = vmatprep.subr.mxu0 0.0
    %603 = vmatpush1.xpose.msra.mxu0 0.0
    %604 = vmatprep.subr.mxu0 0.0
    %605 = vmatpush1.xpose.msra.mxu0 0.0
    %606 = vmatprep.subr.mxu0 0.0
    %607 = vmatpush1.xpose.msra.mxu0 0.0
    %608 = vmatprep.subr.mxu0 0.0
    %609 = vmatpush1.xpose.msra.mxu0 0.0
    %610 = vmatprep.subr.mxu0 0.0
    %611 = vmatpush1.xpose.msra.mxu0 0.0
    %612 = vmatprep.mubr.f32.mxu0 0.0
    %613 = vmatmul.mubr.f32.gmra.mrb[0].mxu0 %v498
    %v614 = vpop.f32.mrb[0].mxu0
    %v615 = vadd.f32 %v496, %v614
    %v616 = vpop.f32.mrb[0].mxu0
    %617 = vdwg.mxu0
    %618 = vst [vmem:[#allocation3] sm:$0x1] %v615
    // Predicated region
    $region30: #{tpu_custom_call.1} parent=1 // pred_check
      _
    $region31: #{tpu_custom_call.1} parent=1 // pred_check_branch
      %620 = sbr.rel (0) target = $region33
    $region32: #{tpu_custom_call.1} parent=1 // pred_region
      %s622 = ssub.s32 16, 16
      %623 = vsyncadd [#allocation4], %s622
      %s625 = sshll.u32 [#allocation3], 4
      %s626 = int_to_ptr.vmem [resolvable:$true] %s625
      %628 = dma.vmem_to_hbm [thread:$0]  %s626, 16, %s7, [#allocation4]
    $region33: #{tpu_custom_call.1} parent=1 // pred_fallthru
      _
    // Predicated region
    $region34: #{tpu_custom_call.1} parent=1 // pred_check
      _
    $region35: #{tpu_custom_call.1} parent=1 // pred_check_branch
      %630 = sbr.rel (0) target = $region37
    $region36: #{tpu_custom_call.1} parent=1 // pred_region
      %631 = dma.done [#allocation4], 16
    $region37: #{tpu_custom_call.1} parent=1 // pred_fallthru
      _
    %632 = vsyncpa [#allocation4], 1

</llo_original>
